<compile_context>
chip_gen: v6e
topology: v6e:2x2x1
jax: 0.10.0
libtpu: 0.0.40
codegen_flags: <defaults>
</compile_context>

<pallas_src>
import functools

import jax
import jax.numpy as jnp
from jax import lax
from jax.experimental import pallas as pl
from jax.experimental.pallas import tpu as pltpu


def _gem_kernel(x_ref, o_ref, *, p, eps, inv_hw):
    # x_ref: (TILE_R, HW) block in VMEM; o_ref: (1, TILE_R) lane-dense output slab.
    x = x_ref[...].astype(jnp.float32)
    x = jnp.maximum(x, eps)                        # clamp(min=eps)
    if p != 1.0:                                   # fast path: this module uses p == 1
        if float(p).is_integer() and p > 0:
            x = lax.integer_pow(x, int(p))         # repeated multiplies, no log/exp
        else:
            x = x ** p
    row_mean = jnp.sum(x, axis=-1) * inv_hw        # (TILE_R,) global avg over H*W
    if p != 1.0:
        row_mean = row_mean ** (1.0 / p)           # only on the tiny reduced vector
    # Lane-dense store: per-row results laid out along the lane dimension.
    o_ref[...] = row_mean[None, :].astype(o_ref.dtype)


def _choose_tile_rows(rows, hw, itemsize):
    # Target ~4 MiB per input block: large enough to amortize the ~0.35 us/step
    # pipeline overhead and reach ~85% of HBM roofline, small enough that two
    # double-buffered blocks fit comfortably on v7x (64 MiB VMEM).
    target_block_bytes = 4 * 1024 * 1024
    tile = max(8, target_block_bytes // (hw * itemsize))
    tile = (tile // 8) * 8                         # sublane alignment (f32)
    rows_padded = ((rows + 7) // 8) * 8
    return max(8, min(tile, rows_padded))


def gem_pallas(x, p=1, eps=1e-6):
    """GeM pooling. x: (N, C, H, W) float array. Returns (N, C, 1, 1)."""
    n, c, h, w = x.shape
    rows = n * c
    hw = h * w
    x2d = x.reshape(rows, hw)                      # free, contiguous reshape
    itemsize = x2d.dtype.itemsize

    tile_r = _choose_tile_rows(rows, hw, itemsize)
    num_tiles = pl.cdiv(rows, tile_r)
    # TODO(synk): for very large H*W (a single (TILE_R, hw) block exceeding the VMEM
    # budget), add a second "arbitrary" grid axis over hw with an f32 accumulator
    # scratch (pl.when init/finalize) instead of shrinking TILE_R.

    p_f = float(p)
    kernel = functools.partial(_gem_kernel, p=p_f, eps=float(eps), inv_hw=1.0 / hw)

    block_bytes = tile_r * hw * itemsize
    # 2x double-buffered input blocks + lane-dense output slabs + headroom;
    # explicit so we neither hit the scoped-VMEM default nor overshoot v7x.
    vmem_limit = int(min(64 * 1024 * 1024,
                         max(8 * 1024 * 1024, 2 * block_bytes + (2 << 20))))

    cost = pl.CostEstimate(
        flops=2 * rows * hw,                                        # clamp + add per elem
        transcendentals=0 if p_f == 1.0 else 2 * rows * hw,
        bytes_accessed=rows * hw * itemsize + rows * itemsize,
    )

    out2d = pl.pallas_call(
        kernel,
        out_shape=jax.ShapeDtypeStruct((num_tiles, tile_r), x.dtype),
        grid_spec=pltpu.PrefetchScalarGridSpec(
            num_scalar_prefetch=0,
            grid=(num_tiles,),
            in_specs=[pl.BlockSpec((tile_r, hw), lambda i: (i, 0))],
            out_specs=pl.BlockSpec((1, tile_r), lambda i: (i, 0)),
        ),
        compiler_params=pltpu.CompilerParams(
            dimension_semantics=("parallel",),     # independent row blocks -> both v7x TCs
            vmem_limit_bytes=vmem_limit,
        ),
        cost_estimate=cost,
    )(x2d)

    # Drop padded tail rows (if rows % tile_r != 0) and restore pooled NCHW shape.
    return out2d.reshape(-1)[:rows].reshape(n, c, 1, 1)


def gem_reference(x, p=1, eps=1e-6):
    # Pure-JAX mirror of F.avg_pool2d(x.clamp(min=eps).pow(p), (H, W)).pow(1/p).
    xc = jnp.maximum(x, eps) ** p
    return jnp.mean(xc, axis=(-2, -1), keepdims=True) ** (1.0 / p)


if __name__ == "__main__":
    key = jax.random.PRNGKey(0)
    # Small NCHW input consistent with what SetNet feeds its GeM layer
    # (frame-pooled feature maps); kept tiny for the smoke test.
    x = jax.random.normal(key, (2, 4, 16, 16), dtype=jnp.float32)

    out = gem_pallas(x, p=1, eps=1e-6)     # SetNet's GeM uses p = 1, eps = 1e-6
    out = jax.block_until_ready(out)

    ref = gem_reference(x, p=1, eps=1e-6)
    assert out.shape == (2, 4, 1, 1), out.shape
    assert jnp.allclose(out, ref, atol=1e-5, rtol=1e-5), (out, ref)

    print("KERNEL_OK")
</pallas_src>

<mosaic_0001>
module attributes {stable_mosaic.version = 11 : i64} {
  func.func @_gem_kernel(%arg0: i32, %arg1: memref<8x256xf32, #tpu.memory_space<vmem>>, %arg2: memref<1x8xf32, #tpu.memory_space<vmem>>) attributes {dimension_semantics = [#tpu.dimension_semantics<parallel>], iteration_bounds = array<i64: 1>, scalar_prefetch = 0 : i64, scratch_operands = 0 : i64, tpu.core_type = #tpu.core_type<tc>, window_params = [{transform_indices = @transform_0, window_bounds = array<i64: 8, 256>}, {transform_indices = @transform_1, window_bounds = array<i64: 1, 8>}]} {
    %c0 = arith.constant 0 : index
    %c0_0 = arith.constant 0 : index
    %0 = vector.load %arg1[%c0, %c0_0] : memref<8x256xf32, #tpu.memory_space<vmem>>, vector<8x256xf32>
    %cst = arith.constant 9.99999997E-7 : f32
    %1 = vector.broadcast %cst : f32 to vector<8x256xf32>
    %2 = arith.maximumf %0, %1 : vector<8x256xf32>
    %cst_1 = arith.constant dense<0.000000e+00> : vector<8xf32>
    %3 = vector.multi_reduction <add>, %2, %cst_1 [1] : vector<8x256xf32> to vector<8xf32>
    %cst_2 = arith.constant 3.906250e-03 : f32
    %4 = vector.broadcast %cst_2 : f32 to vector<8xf32>
    %5 = arith.mulf %3, %4 : vector<8xf32>
    %6 = vector.shape_cast %5 : vector<8xf32> to vector<1x8xf32>
    %c0_3 = arith.constant 0 : index
    %c0_4 = arith.constant 0 : index
    %7 = vector.load %arg2[%c0_3, %c0_4] : memref<1x8xf32, #tpu.memory_space<vmem>>, vector<1x8xf32>
    tpu.vector_store %arg2[%c0_3, %c0_4], %6 {strides = array<i32>} : memref<1x8xf32, #tpu.memory_space<vmem>>, vector<1x8xf32>,
    return
  }
  func.func @transform_0(%arg0: i32) -> (i32, i32) {
    %c0_i32 = arith.constant 0 : i32
    %c0_i32_0 = arith.constant 0 : i32
    return %arg0, %c0_i32 : i32, i32
  }
  func.func @transform_1(%arg0: i32) -> (i32, i32) {
    %c0_i32 = arith.constant 0 : i32
    %c0_i32_0 = arith.constant 0 : i32
    return %arg0, %c0_i32 : i32, i32
  }
}

</mosaic_0001>

<llo_original>
// kernel: tpu_custom_call.1
$region0: #{tpu_custom_call.1}
  #allocation0 [shape = 'u32[]', space=smem, size = 0x4, offset = 0x4, fixed_abs, tag = 'smem constant byte address 0x4 - core index']
  #allocation1 [shape = 'u32[144,128]{1,0:T(1,128)}', space=vmem, size = 0x12000, scoped, tag = 'internal scratch']
  %s0 = inlined_call_operand.hbm [shape: f32[8,256], index: 0, kind: input, shape index: {}]
  %s1 = inlined_call_operand.hbm [shape: f32[1,8], index: 1, kind: output, shape index: {}]
  %s2 = sld [smem:[#allocation0]]
  $region18: #{tpu_custom_call.1} parent=0
    _
  %s4 = ssub.s32 1, %s2
  %s5 = scalar_select 0, %s4, %s2
  $region1: #{tpu_custom_call.1} parent=0
    #allocation2 [shape = 'u8[8192]{0}', space=vmem, size = 0x2000, scoped, tag = 'input window, operand 0, single buffered']
    #allocation3 [shape = 's32[1]{0}', space=sflag, size = 0x4, scoped, tag = 'scoped memory for tpu_custom_call.1']
    #allocation4 [shape = 's32[1]{0}', space=sflag, size = 0x4, scoped, tag = 'scoped memory for tpu_custom_call.1']
    #allocation5 [shape = 'u8[512]{0}', space=vmem, size = 0x400, scoped, tag = 'output window, operand 0, single buffered']
    %6 = vsyncpa [#allocation3], 0
    %7 = vsyncpa [#allocation4], 0
    // Predicated region
    $region2: #{tpu_custom_call.1} parent=1 // pred_check
      _
    $region3: #{tpu_custom_call.1} parent=1 // pred_check_branch
      %9 = sbr.rel (0) target = $region5
    $region4: #{tpu_custom_call.1} parent=1 // pred_region
      %s11 = ssub.s32 256, 256
      %12 = vsyncadd [#allocation3], %s11
      %s14 = sshll.u32 [#allocation2], 4
      %s15 = int_to_ptr.vmem [resolvable:$true] %s14
      %17 = dma.hbm_to_vmem [thread:$0]  %s0, 256, %s15, [#allocation3]
    $region5: #{tpu_custom_call.1} parent=1 // pred_fallthru
      _
    // Predicated region
    $region6: #{tpu_custom_call.1} parent=1 // pred_check
      _
    $region7: #{tpu_custom_call.1} parent=1 // pred_check_branch
      %19 = sbr.rel (0) target = $region9
    $region8: #{tpu_custom_call.1} parent=1 // pred_region
      %20 = dma.done [#allocation3], 256
    $region9: #{tpu_custom_call.1} parent=1 // pred_fallthru
      _
    %v21 = vld [vmem:[#allocation2] sm:$0xff]
    %v22 = vld [vmem:[#allocation2 + $0x8] sm:$0xff]
    %v23 = vmax.f32 %v21, 1e-06
    %v24 = vmax.f32 %v22, 1e-06
    %v25 = vadd.f32 %v23, %v24
    %26 = vadd.xlane.f32.xlu0 %v25
    %v27 = vpop.xlane.xlu0 %26
    %v28 = vmul.f32 %v27, 0.00390625
    %v30 = vlaneseq
    %v31 = vand.u32 %v30, 127
    %v32 = vlaneseq
    %v33 = vshrl.u32 %v32, 7
    %v34 = vsub.s32 %v31, %v33
    %v35 = vrot.slane %v28, %v34
    %vm37 = vcmask 57344
    %38 = vst.msk [vmem:[#allocation5] sm:$0x1] %vm37, %v35
    // Predicated region
    $region10: #{tpu_custom_call.1} parent=1 // pred_check
      _
    $region11: #{tpu_custom_call.1} parent=1 // pred_check_branch
      %40 = sbr.rel (0) target = $region13
    $region12: #{tpu_custom_call.1} parent=1 // pred_region
      %s42 = ssub.s32 16, 16
      %43 = vsyncadd [#allocation4], %s42
      %s45 = sshll.u32 [#allocation5], 4
      %s46 = int_to_ptr.vmem [resolvable:$true] %s45
      %48 = dma.vmem_to_hbm [thread:$0]  %s46, 16, %s1, [#allocation4]
    $region13: #{tpu_custom_call.1} parent=1 // pred_fallthru
      _
    // Predicated region
    $region14: #{tpu_custom_call.1} parent=1 // pred_check
      _
    $region15: #{tpu_custom_call.1} parent=1 // pred_check_branch
      %50 = sbr.rel (0) target = $region17
    $region16: #{tpu_custom_call.1} parent=1 // pred_region
      %51 = dma.done [#allocation4], 16
    $region17: #{tpu_custom_call.1} parent=1 // pred_fallthru
      _
    %52 = vsyncpa [#allocation3], 1
    %53 = vsyncpa [#allocation4], 1

</llo_original>
